<compile_context>
chip_gen: v5e
topology: v5e:2x2
jax: 0.10.0
libtpu: 0.0.40
codegen_flags: <defaults>
</compile_context>

<pallas_src>
import functools
import math

import jax
import jax.numpy as jnp
from jax.experimental import pallas as pl
from jax.experimental.pallas import tpu as pltpu

_LANES = 128


# -----------------------------------------------------------------------------
# Kernel
# -----------------------------------------------------------------------------
def _charbonnier_kernel(p_ref, t_ref, o_ref, acc_ref, *, eps, n_valid):
    """p_ref/t_ref: (BR, 128) input tiles; o_ref: (1, 1) scalar output;
    acc_ref: (BR, 128) f32 VMEM accumulator (resident across the grid)."""
    i = pl.program_id(0)

    @pl.when(i == 0)
    def _():
        acc_ref[...] = jnp.zeros_like(acc_ref)

    p = p_ref[...].astype(jnp.float32)
    t = t_ref[...].astype(jnp.float32)
    d = p - t
    val = jnp.sqrt(d * d + jnp.float32(eps))

    # Mask out padded tail elements (flat index >= n_valid).
    rows, lanes = p_ref.shape
    row_ids = jax.lax.broadcasted_iota(jnp.int32, (rows, lanes), 0)
    lane_ids = jax.lax.broadcasted_iota(jnp.int32, (rows, lanes), 1)
    flat = (i * rows + row_ids) * lanes + lane_ids
    val = jnp.where(flat < n_valid, val, 0.0)

    # Elementwise accumulate (pure VPU work per step; single reduce at the end).
    acc_ref[...] += val

    @pl.when(i == pl.num_programs(0) - 1)
    def _():
        o_ref[...] = (jnp.sum(acc_ref[...]) / jnp.float32(n_valid)).reshape(1, 1)


# -----------------------------------------------------------------------------
# Wrapper
# -----------------------------------------------------------------------------
def charbonnier_loss(prediction, target, eps=1e-6, block_rows=1024):
    """prediction, target: same shape, any rank.  Returns a scalar (f32)."""
    assert prediction.shape == target.shape, "shape mismatch"
    n = math.prod(prediction.shape)

    # Lane-dense layout: flatten to (rows, 128), rows padded to a multiple of
    # the (8-sublane-aligned) block size.
    rows = -(-n // _LANES)                       # ceil
    rows_up8 = ((rows + 7) // 8) * 8
    br = ((int(block_rows) + 7) // 8) * 8        # requested block rows, 8-aligned
    br = max(8, min(br, rows_up8))
    rows_padded = ((rows + br - 1) // br) * br
    n_padded = rows_padded * _LANES
    grid = rows_padded // br

    p = jnp.pad(prediction.reshape(-1), (0, n_padded - n)).reshape(rows_padded,
                                                                   _LANES)
    t = jnp.pad(target.reshape(-1), (0, n_padded - n)).reshape(rows_padded,
                                                               _LANES)

    kernel = functools.partial(_charbonnier_kernel, eps=float(eps), n_valid=n)
    out = pl.pallas_call(
        kernel,
        out_shape=jax.ShapeDtypeStruct((1, 1), jnp.float32),
        grid_spec=pltpu.PrefetchScalarGridSpec(
            num_scalar_prefetch=0,
            grid=(grid,),
            in_specs=[
                pl.BlockSpec((br, _LANES), lambda i: (i, 0)),
                pl.BlockSpec((br, _LANES), lambda i: (i, 0)),
            ],
            out_specs=pl.BlockSpec((1, 1), lambda i: (0, 0)),
            scratch_shapes=[pltpu.VMEM((br, _LANES), jnp.float32)],
        ),
        compiler_params=pltpu.CompilerParams(
            dimension_semantics=("arbitrary",),   # reduction axis (accumulator)
        ),
    )(p, t)
    return out[0, 0]


# -----------------------------------------------------------------------------
# Demo / self-check
# -----------------------------------------------------------------------------
if __name__ == "__main__":
    key = jax.random.PRNGKey(0)
    k_pred, k_targ = jax.random.split(key)

    # [batch=2, channels=4, H=16, W=16]
    prediction = jax.random.normal(k_pred, (2, 4, 16, 16), jnp.float32)
    target = jax.random.normal(k_targ, (2, 4, 16, 16), jnp.float32)

    loss = charbonnier_loss(prediction, target)
    jax.block_until_ready(loss)

    ref = jnp.mean(jnp.sqrt((prediction - target) ** 2 + 1e-6))
    assert loss.shape == () and bool(jnp.isfinite(loss))
    assert bool(jnp.allclose(loss, ref, rtol=1e-5, atol=1e-6)), (loss, ref)

    # Second check: ragged element count (needs tail masking) + multi-step grid
    # accumulation (block_rows=8 -> grid > 1).
    p2 = jax.random.normal(jax.random.PRNGKey(1), (3, 5, 7, 11), jnp.float32)
    t2 = jax.random.normal(jax.random.PRNGKey(2), (3, 5, 7, 11), jnp.float32)
    loss2 = charbonnier_loss(p2, t2, block_rows=8)
    jax.block_until_ready(loss2)
    ref2 = jnp.mean(jnp.sqrt((p2 - t2) ** 2 + 1e-6))
    assert bool(jnp.allclose(loss2, ref2, rtol=1e-5, atol=1e-6)), (loss2, ref2)

    print("KERNEL_OK")
</pallas_src>

<mosaic_0001>
module attributes {stable_mosaic.version = 11 : i64} {
  func.func @_charbonnier_kernel(%arg0: i32, %arg1: memref<16x128xf32, #tpu.memory_space<vmem>>, %arg2: memref<16x128xf32, #tpu.memory_space<vmem>>, %arg3: memref<1x1xf32, #tpu.memory_space<vmem>>, %arg4: memref<16x128xf32, #tpu.memory_space<vmem>>) attributes {dimension_semantics = [#tpu.dimension_semantics<arbitrary>], iteration_bounds = array<i64: 1>, scalar_prefetch = 0 : i64, scratch_operands = 1 : i64, tpu.core_type = #tpu.core_type<tc>, window_params = [{transform_indices = @transform_0, window_bounds = array<i64: 16, 128>}, {transform_indices = @transform_1, window_bounds = array<i64: 16, 128>}, {pipeline_mode = #tpu.pipeline_mode<synchronous>, transform_indices = @transform_2, window_bounds = array<i64: 1, 1>}]} {
    %c0_i32 = arith.constant 0 : i32
    %0 = arith.cmpi eq, %arg0, %c0_i32 : i32
    %1 = arith.extui %0 : i1 to i32
    %c0_i32_0 = arith.constant 0 : i32
    %2 = arith.cmpi ne, %1, %c0_i32_0 : i32
    scf.if %2 {
      %cst_11 = arith.constant 0.000000e+00 : f32
      %28 = vector.broadcast %cst_11 : f32 to vector<16x128xf32>
      %c0_12 = arith.constant 0 : index
      %c0_13 = arith.constant 0 : index
      %29 = vector.load %arg4[%c0_12, %c0_13] : memref<16x128xf32, #tpu.memory_space<vmem>>, vector<16x128xf32>
      tpu.vector_store %arg4[%c0_12, %c0_13], %28 {strides = array<i32>} : memref<16x128xf32, #tpu.memory_space<vmem>>, vector<16x128xf32>,
    } else {
    }
    %c0 = arith.constant 0 : index
    %c0_1 = arith.constant 0 : index
    %3 = vector.load %arg1[%c0, %c0_1] : memref<16x128xf32, #tpu.memory_space<vmem>>, vector<16x128xf32>
    %c0_2 = arith.constant 0 : index
    %c0_3 = arith.constant 0 : index
    %4 = vector.load %arg2[%c0_2, %c0_3] : memref<16x128xf32, #tpu.memory_space<vmem>>, vector<16x128xf32>
    %5 = arith.subf %3, %4 : vector<16x128xf32>
    %6 = arith.mulf %5, %5 : vector<16x128xf32>
    %cst = arith.constant 9.99999997E-7 : f32
    %7 = vector.broadcast %cst : f32 to vector<16x128xf32>
    %8 = arith.addf %6, %7 : vector<16x128xf32>
    %9 = math.sqrt %8 : vector<16x128xf32>
    %10 = tpu.iota {dimensions = array<i32: 0>} : vector<16x128xi32>
    %11 = tpu.iota {dimensions = array<i32: 1>} : vector<16x128xi32>
    %c16_i32 = arith.constant 16 : i32
    %12 = arith.muli %arg0, %c16_i32 : i32
    %13 = vector.broadcast %12 : i32 to vector<16x128xi32>
    %14 = arith.addi %13, %10 : vector<16x128xi32>
    %c128_i32 = arith.constant 128 : i32
    %15 = vector.broadcast %c128_i32 : i32 to vector<16x128xi32>
    %16 = arith.muli %14, %15 : vector<16x128xi32>
    %17 = arith.addi %16, %11 : vector<16x128xi32>
    %c2048_i32 = arith.constant 2048 : i32
    %18 = vector.broadcast %c2048_i32 : i32 to vector<16x128xi32>
    %19 = arith.cmpi slt, %17, %18 : vector<16x128xi32>
    %cst_4 = arith.constant 0.000000e+00 : f32
    %20 = vector.broadcast %cst_4 : f32 to vector<16x128xf32>
    %21 = arith.select %19, %9, %20 : vector<16x128xi1>, vector<16x128xf32>
    %c0_5 = arith.constant 0 : index
    %c0_6 = arith.constant 0 : index
    %22 = vector.load %arg4[%c0_5, %c0_6] : memref<16x128xf32, #tpu.memory_space<vmem>>, vector<16x128xf32>
    %23 = arith.addf %22, %21 : vector<16x128xf32>
    %c0_7 = arith.constant 0 : index
    %c0_8 = arith.constant 0 : index
    %24 = vector.load %arg4[%c0_7, %c0_8] : memref<16x128xf32, #tpu.memory_space<vmem>>, vector<16x128xf32>
    tpu.vector_store %arg4[%c0_7, %c0_8], %23 {strides = array<i32>} : memref<16x128xf32, #tpu.memory_space<vmem>>, vector<16x128xf32>,
    %c0_i32_9 = arith.constant 0 : i32
    %25 = arith.cmpi eq, %arg0, %c0_i32_9 : i32
    %26 = arith.extui %25 : i1 to i32
    %c0_i32_10 = arith.constant 0 : i32
    %27 = arith.cmpi ne, %26, %c0_i32_10 : i32
    scf.if %27 {
      %c0_11 = arith.constant 0 : index
      %c0_12 = arith.constant 0 : index
      %28 = vector.load %arg4[%c0_11, %c0_12] : memref<16x128xf32, #tpu.memory_space<vmem>>, vector<16x128xf32>
      %29 = vector.shape_cast %28 : vector<16x128xf32> to vector<1x16x128xf32>
      %cst_13 = arith.constant dense<0.000000e+00> : vector<1xf32>
      %30 = vector.multi_reduction <add>, %29, %cst_13 [1, 2] : vector<1x16x128xf32> to vector<1xf32>
      %31 = vector.shape_cast %30 : vector<1xf32> to vector<1x1x1xf32>
      %32 = vector.extract %31[0, 0, 0] : f32 from vector<1x1x1xf32>
      %cst_14 = arith.constant 2.048000e+03 : f32
      %33 = arith.divf %32, %cst_14 : f32
      %34 = vector.broadcast %33 : f32 to vector<1x1xf32>
      %c0_15 = arith.constant 0 : index
      %c0_16 = arith.constant 0 : index
      %35 = vector.load %arg3[%c0_15, %c0_16] : memref<1x1xf32, #tpu.memory_space<vmem>>, vector<1x1xf32>
      tpu.vector_store %arg3[%c0_15, %c0_16], %34 {strides = array<i32>} : memref<1x1xf32, #tpu.memory_space<vmem>>, vector<1x1xf32>,
    } else {
    }
    return
  }
  func.func @transform_0(%arg0: i32) -> (i32, i32) {
    %c0_i32 = arith.constant 0 : i32
    %c0_i32_0 = arith.constant 0 : i32
    return %arg0, %c0_i32 : i32, i32
  }
  func.func @transform_1(%arg0: i32) -> (i32, i32) {
    %c0_i32 = arith.constant 0 : i32
    %c0_i32_0 = arith.constant 0 : i32
    return %arg0, %c0_i32 : i32, i32
  }
  func.func @transform_2(%arg0: i32) -> (i32, i32) {
    %c0_i32 = arith.constant 0 : i32
    %c0_i32_0 = arith.constant 0 : i32
    %c0_i32_1 = arith.constant 0 : i32
    return %c0_i32, %c0_i32_0 : i32, i32
  }
}

</mosaic_0001>

<llo_original>
// kernel: tpu_custom_call.1
$region0: #{tpu_custom_call.1}
  #allocation0 [shape = 'u32[]', space=smem, size = 0x4, offset = 0x4, fixed_abs, tag = 'smem constant byte address 0x4 - core index']
  #allocation1 [shape = 'u32[72,128]{1,0:T(1,128)}', space=vmem, size = 0x9000, scoped, tag = 'internal scratch']
  #allocation2 [shape = 'f32[16,128]{1,0:T(8,128)}', space=vmem, size = 0x2000, scoped, tag = 'scratch operand']
  %s0 = inlined_call_operand.hbm [shape: f32[16,128], index: 0, kind: input, shape index: {}]
  %s1 = inlined_call_operand.hbm [shape: f32[16,128], index: 1, kind: input, shape index: {}]
  %s2 = inlined_call_operand.hbm [shape: f32[1,1], index: 2, kind: output, shape index: {}]
  %s3 = sld [smem:[#allocation0]]
  $region34: #{tpu_custom_call.1} parent=0
    _
  %s5 = ssub.s32 1, %s3
  %s6 = scalar_select 0, %s5, %s3
  $region1: #{tpu_custom_call.1} parent=0
    #allocation3 [shape = 'u8[8192]{0}', space=vmem, size = 0x2000, scoped, tag = 'input window, operand 0, single buffered']
    #allocation4 [shape = 's32[1]{0}', space=sflag, size = 0x4, scoped, tag = 'scoped memory for tpu_custom_call.1']
    #allocation5 [shape = 's32[1]{0}', space=sflag, size = 0x4, scoped, tag = 'scoped memory for tpu_custom_call.1']
    #allocation6 [shape = 'u8[8192]{0}', space=vmem, size = 0x2000, scoped, tag = 'input window, operand 1, single buffered']
    #allocation7 [shape = 's32[1]{0}', space=sflag, size = 0x4, scoped, tag = 'scoped memory for tpu_custom_call.1']
    #allocation8 [shape = 'u8[512]{0}', space=vmem, size = 0x400, scoped, tag = 'output window, operand 0, single buffered']
    %7 = vsyncpa [#allocation4], 0
    %8 = vsyncpa [#allocation7], 0
    %9 = vsyncpa [#allocation5], 0
    // Predicated region
    $region2: #{tpu_custom_call.1} parent=1 // pred_check
      _
    $region3: #{tpu_custom_call.1} parent=1 // pred_check_branch
      %11 = sbr.rel (0) target = $region5
    $region4: #{tpu_custom_call.1} parent=1 // pred_region
      %13 = vsyncadd [#allocation4], 0
      %s14 = sshll.u32 %s0, 4
      %s15 = int_to_ptr.hbm [resolvable:$true] %s14
      %s16 = sshll.u32 [#allocation3], 4
      %s17 = int_to_ptr.vmem [resolvable:$true] %s16
      %22 = dma.hbm_to_vmem [thread:$0]  %s15, 256, %s17, [#allocation4], 128, 128, 8
    $region5: #{tpu_custom_call.1} parent=1 // pred_fallthru
      _
    // Predicated region
    $region6: #{tpu_custom_call.1} parent=1 // pred_check
      _
    $region7: #{tpu_custom_call.1} parent=1 // pred_check_branch
      %24 = sbr.rel (0) target = $region9
    $region8: #{tpu_custom_call.1} parent=1 // pred_region
      %26 = vsyncadd [#allocation7], 0
      %s27 = sshll.u32 %s1, 4
      %s28 = int_to_ptr.hbm [resolvable:$true] %s27
      %s29 = sshll.u32 [#allocation6], 4
      %s30 = int_to_ptr.vmem [resolvable:$true] %s29
      %35 = dma.hbm_to_vmem [thread:$0]  %s28, 256, %s30, [#allocation7], 128, 128, 8
    $region9: #{tpu_custom_call.1} parent=1 // pred_fallthru
      _
    // Predicated region
    $region10: #{tpu_custom_call.1} parent=1 // pred_check
      _
    $region11: #{tpu_custom_call.1} parent=1 // pred_check_branch
      %37 = sbr.rel (0) target = $region13
    $region12: #{tpu_custom_call.1} parent=1 // pred_region
      %39 = dma.done [#allocation4], 256
    $region13: #{tpu_custom_call.1} parent=1 // pred_fallthru
      _
    // Predicated region
    $region14: #{tpu_custom_call.1} parent=1 // pred_check
      _
    $region15: #{tpu_custom_call.1} parent=1 // pred_check_branch
      %41 = sbr.rel (0) target = $region17
    $region16: #{tpu_custom_call.1} parent=1 // pred_region
      %43 = dma.done [#allocation7], 256
    $region17: #{tpu_custom_call.1} parent=1 // pred_fallthru
      _
    %p44 = scmp.eq.s32.totalorder 0, 0
    // Predicated region
    $region18: #{tpu_custom_call.1} parent=1 // pred_check
      %p45 = pneg %p44
    $region19: #{tpu_custom_call.1} parent=1 // pred_check_branch
      %47 = sbr.rel (%p45) target = $region21
    $region20: #{tpu_custom_call.1} parent=1 // pred_region
      %48 = vst [vmem:[#allocation2] sm:$0xff] 0.0
      %49 = vst [vmem:[#allocation2 + $0x8] sm:$0xff] 0.0
    $region21: #{tpu_custom_call.1} parent=1 // pred_fallthru
      _
    %v50 = vld [vmem:[#allocation3] sm:$0xff]
    %v51 = vld [vmem:[#allocation3 + $0x8] sm:$0xff]
    %v52 = vld [vmem:[#allocation6] sm:$0xff]
    %v53 = vld [vmem:[#allocation6 + $0x8] sm:$0xff]
    %v54 = vsub.f32 %v50, %v52
    %v55 = vsub.f32 %v51, %v53
    %v56 = vmul.f32 %v54, %v54
    %v57 = vmul.f32 %v55, %v55
    %v58 = vadd.f32 %v56, 1e-06
    %v59 = vadd.f32 %v57, 1e-06
    %v60 = vrsqrt.pop %v58
    %v61 = vmul.f32 %v60, %v58
    %v62 = vmul.f32 %v61, %v60
    %v63 = vmul.f32 0.5, %v62
    %v64 = vsub.f32 1.5, %v63
    %v65 = vmul.f32 %v60, %v64
    %v66 = vmul.f32 %v58, %v65
    %vm67 = vcmp.eq.f32.partialorder %v58, inf
    %v68 = vsel %vm67, %v58, %v66
    %vm69 = vcmp.eq.f32.partialorder %v58, 0.0
    %v70 = vand.u32 %v58, 2147483648
    %v71 = vsel %vm69, %v70, %v68
    %v72 = vrsqrt.pop %v59
    %v73 = vmul.f32 %v72, %v59
    %v74 = vmul.f32 %v73, %v72
    %v75 = vmul.f32 0.5, %v74
    %v76 = vsub.f32 1.5, %v75
    %v77 = vmul.f32 %v72, %v76
    %v78 = vmul.f32 %v59, %v77
    %vm79 = vcmp.eq.f32.partialorder %v59, inf
    %v80 = vsel %vm79, %v59, %v78
    %vm81 = vcmp.eq.f32.partialorder %v59, 0.0
    %v82 = vand.u32 %v59, 2147483648
    %v83 = vsel %vm81, %v82, %v80
    %v84 = vlaneseq
    %v85 = vshrl.u32 %v84, 7
    %v86 = vadd.s32 %v85, 8
    %v87 = vlaneseq
    %v88 = vand.u32 %v87, 127
    %s89 = smul.u32 0, 16
    %v90 = vstv %s89
    %v91 = vadd.s32 %v90, %v85
    %v92 = vadd.s32 %v90, %v86
    %v93 = vmul.u32 %v91, 128
    %v94 = vmul.u32 %v92, 128
    %v95 = vadd.s32 %v93, %v88
    %v96 = vadd.s32 %v94, %v88
    %vm97 = vcmp.lt.s32.totalorder %v95, 2048
    %vm98 = vcmp.lt.s32.totalorder %v96, 2048
    %v99 = vsel %vm97, %v71, 0.0
    %v100 = vsel %vm98, %v83, 0.0
    %v101 = vld [vmem:[#allocation2] sm:$0xff]
    %v102 = vld [vmem:[#allocation2 + $0x8] sm:$0xff]
    %v103 = vadd.f32 %v101, %v99
    %v104 = vadd.f32 %v102, %v100
    %105 = vst [vmem:[#allocation2] sm:$0xff] %v103
    %106 = vst [vmem:[#allocation2 + $0x8] sm:$0xff] %v104
    // Predicated region
    $region22: #{tpu_custom_call.1} parent=1 // pred_check
      %p107 = pneg %p44
    $region23: #{tpu_custom_call.1} parent=1 // pred_check_branch
      %109 = sbr.rel (%p107) target = $region25
    $region24: #{tpu_custom_call.1} parent=1 // pred_region
      %v110 = vld [vmem:[#allocation2] sm:$0xff]
      %v111 = vld [vmem:[#allocation2 + $0x8] sm:$0xff]
      %v112 = vadd.f32 %v110, %v111
      %113 = vadd.xlane.f32.xlu0 %v112
      %v114 = vpop.xlane.xlu0 %113
      %v115 = vrot.slane %v114, 4
      %v116 = vadd.f32 %v114, %v115
      %v117 = vrot.slane %v116, 2
      %v118 = vadd.f32 %v116, %v117
      %v119 = vrot.slane %v118, 1
      %v120 = vadd.f32 %v118, %v119
      %s121 = vtos %v120
      %v122 = vrcp.pop 2048.0
      %v123 = vmul.f32 2048.0, %v122
      %v124 = vsub.f32 1.0, %v123
      %v125 = vmul.f32 %v122, %v124
      %v126 = vadd.f32 %v122, %v125
      %vm127 = vweird.f32 %v122
      %v128 = vsel %vm127, %v122, %v126
      %s129 = vtos %v128
      %s130 = smul.f32 %s121, %s129
      %v131 = vstv %s130
      %vm132 = vcmask 0
      %133 = vst.msk [vmem:[#allocation8] sm:$0x1] %vm132, %v131
    $region25: #{tpu_custom_call.1} parent=1 // pred_fallthru
      _
    // Predicated region
    $region26: #{tpu_custom_call.1} parent=1 // pred_check
      _
    $region27: #{tpu_custom_call.1} parent=1 // pred_check_branch
      %135 = sbr.rel (0) target = $region29
    $region28: #{tpu_custom_call.1} parent=1 // pred_region
      %137 = vsyncadd [#allocation5], 0
      %s139 = sshll.u32 [#allocation8], 4
      %s140 = int_to_ptr.vmem [resolvable:$true] %s139
      %s141 = sshll.u32 %s2, 4
      %s142 = int_to_ptr.hbm [resolvable:$true] %s141
      %144 = dma.vmem_to_hbm [thread:$0]  %s140, 16, %s142, [#allocation5]
    $region29: #{tpu_custom_call.1} parent=1 // pred_fallthru
      _
    // Predicated region
    $region30: #{tpu_custom_call.1} parent=1 // pred_check
      _
    $region31: #{tpu_custom_call.1} parent=1 // pred_check_branch
      %146 = sbr.rel (0) target = $region33
    $region32: #{tpu_custom_call.1} parent=1 // pred_region
      %148 = dma.done [#allocation5], 16
    $region33: #{tpu_custom_call.1} parent=1 // pred_fallthru
      _
    %149 = vsyncpa [#allocation4], 1
    %150 = vsyncpa [#allocation7], 1
    %151 = vsyncpa [#allocation5], 1

</llo_original>
